<compile_context>
chip_gen: v7x
topology: tpu7x:2x2x1
jax: 0.10.0
libtpu: 0.0.40
codegen_flags: <defaults>
</compile_context>

<pallas_src>
import functools

import jax
import jax.numpy as jnp
from jax.experimental import pallas as pl
from jax.experimental.pallas import tpu as pltpu


def _ce_kernel(logits_ref, targets_ref, loss_ref, m_sc, s_sc, t_sc, *,
               n_rows, n_cols, tile_rows, tile_cols):
    """Online-logsumexp cross entropy over one (row tile, class chunk) cell.

    logits_ref : (TM, TC) input-dtype VMEM chunk of logits
    targets_ref: (TM, 1)  int32 target class ids (same block for every chunk)
    loss_ref   : (1, 1, 1) f32 per-row-tile partial sum (written on last chunk)
    m_sc/s_sc/t_sc : (TM, 1) f32 running max / sum-exp / target-logit scratch
    """
    i = pl.program_id(0)           # row-tile index   ("parallel")
    j = pl.program_id(1)           # class-chunk index ("arbitrary", reduction)
    n_j = pl.num_programs(1)

    @pl.when(j == 0)
    def _init():
        m_sc[...] = jnp.full_like(m_sc, -jnp.inf)
        s_sc[...] = jnp.zeros_like(s_sc)
        t_sc[...] = jnp.zeros_like(t_sc)

    chunk = logits_ref[...].astype(jnp.float32)                 # (TM, TC) f32
    tgt = targets_ref[...]                                      # (TM, 1) int32

    # Local (within-chunk) column index; all per-step varying offsets are kept
    # on the scalar / (TM,1) side so the big (TM,TC) iota stays step-invariant.
    col = jax.lax.broadcasted_iota(jnp.int32, chunk.shape, 1)   # (TM, TC)
    col_off = j * tile_cols

    if n_cols % tile_cols != 0:
        # Ragged last class chunk: mask pad lanes out of the max / exp.
        masked = jnp.where(col < (n_cols - col_off), chunk, -jnp.inf)
    else:
        masked = chunk

    # Online log-sum-exp update.
    m_prev = m_sc[...]
    m_new = jnp.maximum(m_prev, jnp.max(masked, axis=-1, keepdims=True))
    alpha = jnp.exp(m_prev - m_new)
    s_sc[...] = alpha * s_sc[...] + jnp.sum(jnp.exp(masked - m_new),
                                            axis=-1, keepdims=True)
    m_sc[...] = m_new

    # Accumulate logits[row, target[row]]; exactly one chunk matches per row.
    t_sc[...] += jnp.sum(jnp.where(col == (tgt - col_off), chunk, 0.0),
                         axis=-1, keepdims=True)

    @pl.when(j == n_j - 1)
    def _finalize():
        lse = m_sc[...] + jnp.log(s_sc[...])
        per_row = lse - t_sc[...]                               # (TM, 1)
        # Mask padded rows (ragged last row tile) BEFORE the cross-row sum.
        row = i * tile_rows + jax.lax.broadcasted_iota(
            jnp.int32, (tile_rows, 1), 0)
        per_row = jnp.where(row < n_rows, per_row, 0.0)
        loss_ref[...] = jnp.sum(per_row, axis=0, keepdims=True).reshape(1, 1, 1)


def _vmem_limit_bytes():
    """Generation-aware scoped-VMEM limit (v5e/v6e: 96 MiB, v7x: 48 MiB)."""
    try:
        cap = int(pltpu.get_tpu_info().vmem_capacity_bytes)
    except Exception:
        cap = 64 << 20          # conservative: v7x per-TensorCore physical VMEM
    return int(min(cap * 3 // 4, 96 << 20))


def cross_entropy_loss_pallas(y_pred, y_true, *,
                              max_rows_per_tile=8192,
                              max_cols_per_tile=2048):
    """Pallas equivalent of MyLoss.forward: returns {'loss': scalar}."""
    B, S, C = y_pred.shape
    N = B * S
    in_bytes = jnp.dtype(y_pred.dtype).itemsize

    # --- class-chunk size (lane axis): full C if small, else multiple of 128.
    if C <= max_cols_per_tile:
        tc = C
    else:
        tc = max(128, (max_cols_per_tile // 128) * 128)
    n_col_tiles = pl.cdiv(C, tc)

    # --- row-tile size from a VMEM budget that counts everything live per row:
    #   2 * tc * in_bytes : double-buffered input chunk
    #   16 * tc           : ~4 live (TM, TC) f32 intermediates (upcast/exp/select)
    #   2560              : lane-padded (TM,1) targets (x2 buf) + 3 f32 scratch
    vmem_limit = _vmem_limit_bytes()
    tile_budget = vmem_limit // 2
    per_row_bytes = 2 * tc * in_bytes + 16 * tc + 2560
    tm = (tile_budget // per_row_bytes) // 8 * 8
    tm = int(max(8, min(tm, max_rows_per_tile)))
    tm = min(tm, ((N + 7) // 8) * 8)          # don't exceed the (8-rounded) problem
    n_row_tiles = pl.cdiv(N, tm)

    # No padding: ragged last row tile / class chunk are masked in the kernel.
    logits = y_pred.reshape(N, C)
    targets = y_true.reshape(N, 1).astype(jnp.int32)

    cost = pl.CostEstimate(
        flops=6 * N * C,
        transcendentals=N * C + 2 * N * n_col_tiles,
        bytes_accessed=N * C * in_bytes + N * 4 + n_row_tiles * 4,
    )

    partials = pl.pallas_call(
        functools.partial(_ce_kernel, n_rows=N, n_cols=C,
                          tile_rows=tm, tile_cols=tc),
        out_shape=jax.ShapeDtypeStruct((n_row_tiles, 1, 1), jnp.float32),
        grid_spec=pltpu.PrefetchScalarGridSpec(
            num_scalar_prefetch=0,
            grid=(n_row_tiles, n_col_tiles),
            in_specs=[
                pl.BlockSpec((tm, tc), lambda i, j: (i, j)),   # logits chunk
                pl.BlockSpec((tm, 1), lambda i, j: (i, 0)),    # targets (resident)
            ],
            out_specs=pl.BlockSpec((1, 1, 1), lambda i, j: (i, 0, 0)),
            scratch_shapes=[
                pltpu.VMEM((tm, 1), jnp.float32),   # running max
                pltpu.VMEM((tm, 1), jnp.float32),   # running sum-exp
                pltpu.VMEM((tm, 1), jnp.float32),   # target logit
            ],
        ),
        compiler_params=pltpu.CompilerParams(
            dimension_semantics=("parallel", "arbitrary"),
            vmem_limit_bytes=vmem_limit,
        ),
        cost_estimate=cost,
    )(logits, targets)

    loss = jnp.sum(partials) / jnp.float32(N)
    return {"loss": loss}


def _reference_loss(y_pred, y_true):
    C = y_pred.shape[-1]
    logits = y_pred.reshape(-1, C).astype(jnp.float32)
    tgt = y_true.reshape(-1)
    return jnp.mean(jax.nn.logsumexp(logits, axis=-1)
                    - logits[jnp.arange(logits.shape[0]), tgt])


if __name__ == "__main__":
    key = jax.random.PRNGKey(0)
    ks = jax.random.split(key, 6)

    # Case 1: nominal small shape (batch=2, seq=8, classes=32).
    B, S, C = 2, 8, 32
    y_pred = jax.random.normal(ks[0], (B, S, C), dtype=jnp.float32)
    y_true = jax.random.randint(ks[1], (B, S), 0, C, dtype=jnp.int32)
    loss = jax.block_until_ready(cross_entropy_loss_pallas(y_pred, y_true)["loss"])
    ref = _reference_loss(y_pred, y_true)
    assert jnp.allclose(loss, ref, atol=1e-5, rtol=1e-5), (loss, ref)

    # Case 2: N not a multiple of 8 (ragged last row tile, no wrapper pad).
    B2, S2, C2 = 3, 5, 40
    y_pred2 = jax.random.normal(ks[2], (B2, S2, C2), dtype=jnp.float32)
    y_true2 = jax.random.randint(ks[3], (B2, S2), 0, C2, dtype=jnp.int32)
    loss2 = jax.block_until_ready(cross_entropy_loss_pallas(y_pred2, y_true2)["loss"])
    ref2 = _reference_loss(y_pred2, y_true2)
    assert jnp.allclose(loss2, ref2, atol=1e-5, rtol=1e-5), (loss2, ref2)

    # Case 3: force tiny tiles to exercise the multi-row-tile grid and the
    # chunked online-logsumexp class axis (ragged last chunk) at small shape.
    B3, S3, C3 = 2, 16, 160
    y_pred3 = jax.random.normal(ks[4], (B3, S3, C3), dtype=jnp.float32)
    y_true3 = jax.random.randint(ks[5], (B3, S3), 0, C3, dtype=jnp.int32)
    loss3 = jax.block_until_ready(
        cross_entropy_loss_pallas(y_pred3, y_true3,
                                  max_rows_per_tile=8,
                                  max_cols_per_tile=128)["loss"])
    ref3 = _reference_loss(y_pred3, y_true3)
    assert jnp.allclose(loss3, ref3, atol=1e-5, rtol=1e-5), (loss3, ref3)

    print("KERNEL_OK")
</pallas_src>

<mosaic_0001>
module attributes {stable_mosaic.version = 11 : i64} {
  func.func @_ce_kernel(%arg0: i32, %arg1: i32, %arg2: memref<16x32xf32, #tpu.memory_space<vmem>>, %arg3: memref<16x1xi32, #tpu.memory_space<vmem>>, %arg4: memref<1x1x1xf32, #tpu.memory_space<vmem>>, %arg5: memref<16x1xf32, #tpu.memory_space<vmem>>, %arg6: memref<16x1xf32, #tpu.memory_space<vmem>>, %arg7: memref<16x1xf32, #tpu.memory_space<vmem>>) attributes {dimension_semantics = [#tpu.dimension_semantics<parallel>, #tpu.dimension_semantics<arbitrary>], iteration_bounds = array<i64: 1, 1>, scalar_prefetch = 0 : i64, scratch_operands = 3 : i64, tpu.core_type = #tpu.core_type<tc>, window_params = [{transform_indices = @transform_0, window_bounds = array<i64: 16, 32>}, {transform_indices = @transform_1, window_bounds = array<i64: 16, 1>}, {transform_indices = @transform_2, window_bounds = array<i64: 1, 1, 1>}]} {
    %c0_i32 = arith.constant 0 : i32
    %0 = arith.cmpi eq, %arg1, %c0_i32 : i32
    %1 = arith.extui %0 : i1 to i32
    %c0_i32_0 = arith.constant 0 : i32
    %2 = arith.cmpi ne, %1, %c0_i32_0 : i32
    scf.if %2 {
      %cst_21 = arith.constant 0xFF800000 : f32
      %37 = vector.broadcast %cst_21 : f32 to vector<16x1xf32>
      %c0_22 = arith.constant 0 : index
      %c0_23 = arith.constant 0 : index
      %38 = vector.load %arg5[%c0_22, %c0_23] : memref<16x1xf32, #tpu.memory_space<vmem>>, vector<16x1xf32>
      tpu.vector_store %arg5[%c0_22, %c0_23], %37 {strides = array<i32>} : memref<16x1xf32, #tpu.memory_space<vmem>>, vector<16x1xf32>,
      %cst_24 = arith.constant 0.000000e+00 : f32
      %39 = vector.broadcast %cst_24 : f32 to vector<16x1xf32>
      %c0_25 = arith.constant 0 : index
      %c0_26 = arith.constant 0 : index
      %40 = vector.load %arg6[%c0_25, %c0_26] : memref<16x1xf32, #tpu.memory_space<vmem>>, vector<16x1xf32>
      tpu.vector_store %arg6[%c0_25, %c0_26], %39 {strides = array<i32>} : memref<16x1xf32, #tpu.memory_space<vmem>>, vector<16x1xf32>,
      %cst_27 = arith.constant 0.000000e+00 : f32
      %41 = vector.broadcast %cst_27 : f32 to vector<16x1xf32>
      %c0_28 = arith.constant 0 : index
      %c0_29 = arith.constant 0 : index
      %42 = vector.load %arg7[%c0_28, %c0_29] : memref<16x1xf32, #tpu.memory_space<vmem>>, vector<16x1xf32>
      tpu.vector_store %arg7[%c0_28, %c0_29], %41 {strides = array<i32>} : memref<16x1xf32, #tpu.memory_space<vmem>>, vector<16x1xf32>,
    } else {
    }
    %c0 = arith.constant 0 : index
    %c0_1 = arith.constant 0 : index
    %3 = vector.load %arg2[%c0, %c0_1] : memref<16x32xf32, #tpu.memory_space<vmem>>, vector<16x32xf32>
    %c0_2 = arith.constant 0 : index
    %c0_3 = arith.constant 0 : index
    %4 = vector.load %arg3[%c0_2, %c0_3] : memref<16x1xi32, #tpu.memory_space<vmem>>, vector<16x1xi32>
    %5 = tpu.iota {dimensions = array<i32: 1>} : vector<16x32xi32>
    %c32_i32 = arith.constant 32 : i32
    %6 = arith.muli %arg1, %c32_i32 : i32
    %c0_4 = arith.constant 0 : index
    %c0_5 = arith.constant 0 : index
    %7 = vector.load %arg5[%c0_4, %c0_5] : memref<16x1xf32, #tpu.memory_space<vmem>>, vector<16x1xf32>
    %cst = arith.constant dense<0xFF800000> : vector<16xf32>
    %8 = vector.multi_reduction <maximumf>, %3, %cst [1] : vector<16x32xf32> to vector<16xf32>
    %9 = vector.shape_cast %8 : vector<16xf32> to vector<16x1xf32>
    %10 = arith.maximumf %7, %9 : vector<16x1xf32>
    %11 = arith.subf %7, %10 : vector<16x1xf32>
    %12 = math.exp %11 : vector<16x1xf32>
    %c0_6 = arith.constant 0 : index
    %c0_7 = arith.constant 0 : index
    %13 = vector.load %arg6[%c0_6, %c0_7] : memref<16x1xf32, #tpu.memory_space<vmem>>, vector<16x1xf32>
    %14 = arith.mulf %12, %13 : vector<16x1xf32>
    %15 = vector.broadcast %10 : vector<16x1xf32> to vector<16x32xf32>
    %16 = arith.subf %3, %15 : vector<16x32xf32>
    %17 = math.exp %16 : vector<16x32xf32>
    %cst_8 = arith.constant dense<0.000000e+00> : vector<16xf32>
    %18 = vector.multi_reduction <add>, %17, %cst_8 [1] : vector<16x32xf32> to vector<16xf32>
    %19 = vector.shape_cast %18 : vector<16xf32> to vector<16x1xf32>
    %20 = arith.addf %14, %19 : vector<16x1xf32>
    %c0_9 = arith.constant 0 : index
    %c0_10 = arith.constant 0 : index
    %21 = vector.load %arg6[%c0_9, %c0_10] : memref<16x1xf32, #tpu.memory_space<vmem>>, vector<16x1xf32>
    tpu.vector_store %arg6[%c0_9, %c0_10], %20 {strides = array<i32>} : memref<16x1xf32, #tpu.memory_space<vmem>>, vector<16x1xf32>,
    %c0_11 = arith.constant 0 : index
    %c0_12 = arith.constant 0 : index
    %22 = vector.load %arg5[%c0_11, %c0_12] : memref<16x1xf32, #tpu.memory_space<vmem>>, vector<16x1xf32>
    tpu.vector_store %arg5[%c0_11, %c0_12], %10 {strides = array<i32>} : memref<16x1xf32, #tpu.memory_space<vmem>>, vector<16x1xf32>,
    %c0_13 = arith.constant 0 : index
    %c0_14 = arith.constant 0 : index
    %23 = vector.load %arg7[%c0_13, %c0_14] : memref<16x1xf32, #tpu.memory_space<vmem>>, vector<16x1xf32>
    %24 = vector.broadcast %6 : i32 to vector<16x1xi32>
    %25 = arith.subi %4, %24 : vector<16x1xi32>
    %26 = vector.broadcast %25 : vector<16x1xi32> to vector<16x32xi32>
    %27 = arith.cmpi eq, %5, %26 : vector<16x32xi32>
    %cst_15 = arith.constant 0.000000e+00 : f32
    %28 = vector.broadcast %cst_15 : f32 to vector<16x32xf32>
    %29 = arith.select %27, %3, %28 : vector<16x32xi1>, vector<16x32xf32>
    %cst_16 = arith.constant dense<0.000000e+00> : vector<16xf32>
    %30 = vector.multi_reduction <add>, %29, %cst_16 [1] : vector<16x32xf32> to vector<16xf32>
    %31 = vector.shape_cast %30 : vector<16xf32> to vector<16x1xf32>
    %32 = arith.addf %23, %31 : vector<16x1xf32>
    %c0_17 = arith.constant 0 : index
    %c0_18 = arith.constant 0 : index
    %33 = vector.load %arg7[%c0_17, %c0_18] : memref<16x1xf32, #tpu.memory_space<vmem>>, vector<16x1xf32>
    tpu.vector_store %arg7[%c0_17, %c0_18], %32 {strides = array<i32>} : memref<16x1xf32, #tpu.memory_space<vmem>>, vector<16x1xf32>,
    %c0_i32_19 = arith.constant 0 : i32
    %34 = arith.cmpi eq, %arg1, %c0_i32_19 : i32
    %35 = arith.extui %34 : i1 to i32
    %c0_i32_20 = arith.constant 0 : i32
    %36 = arith.cmpi ne, %35, %c0_i32_20 : i32
    scf.if %36 {
      %c0_21 = arith.constant 0 : index
      %c0_22 = arith.constant 0 : index
      %37 = vector.load %arg5[%c0_21, %c0_22] : memref<16x1xf32, #tpu.memory_space<vmem>>, vector<16x1xf32>
      %c0_23 = arith.constant 0 : index
      %c0_24 = arith.constant 0 : index
      %38 = vector.load %arg6[%c0_23, %c0_24] : memref<16x1xf32, #tpu.memory_space<vmem>>, vector<16x1xf32>
      %39 = math.log %38 : vector<16x1xf32>
      %40 = arith.addf %37, %39 : vector<16x1xf32>
      %c0_25 = arith.constant 0 : index
      %c0_26 = arith.constant 0 : index
      %41 = vector.load %arg7[%c0_25, %c0_26] : memref<16x1xf32, #tpu.memory_space<vmem>>, vector<16x1xf32>
      %42 = arith.subf %40, %41 : vector<16x1xf32>
      %c16_i32 = arith.constant 16 : i32
      %43 = arith.muli %arg0, %c16_i32 : i32
      %44 = tpu.iota {dimensions = array<i32: 0>} : vector<16x1xi32>
      %45 = vector.broadcast %43 : i32 to vector<16x1xi32>
      %46 = arith.addi %45, %44 : vector<16x1xi32>
      %c16_i32_27 = arith.constant 16 : i32
      %47 = vector.broadcast %c16_i32_27 : i32 to vector<16x1xi32>
      %48 = arith.cmpi slt, %46, %47 : vector<16x1xi32>
      %cst_28 = arith.constant 0.000000e+00 : f32
      %49 = vector.broadcast %cst_28 : f32 to vector<16x1xf32>
      %50 = arith.select %48, %42, %49 : vector<16x1xi1>, vector<16x1xf32>
      %cst_29 = arith.constant dense<0.000000e+00> : vector<1xf32>
      %51 = vector.multi_reduction <add>, %50, %cst_29 [0] : vector<16x1xf32> to vector<1xf32>
      %52 = vector.shape_cast %51 : vector<1xf32> to vector<1x1xf32>
      %53 = vector.shape_cast %52 : vector<1x1xf32> to vector<1x1x1xf32>
      %c0_30 = arith.constant 0 : index
      %c0_31 = arith.constant 0 : index
      %c0_32 = arith.constant 0 : index
      %54 = vector.load %arg4[%c0_30, %c0_31, %c0_32] : memref<1x1x1xf32, #tpu.memory_space<vmem>>, vector<1x1x1xf32>
      tpu.vector_store %arg4[%c0_30, %c0_31, %c0_32], %53 {strides = array<i32>} : memref<1x1x1xf32, #tpu.memory_space<vmem>>, vector<1x1x1xf32>,
    } else {
    }
    return
  }
  func.func @transform_0(%arg0: i32, %arg1: i32) -> (i32, i32) {
    %c0_i32 = arith.constant 0 : i32
    return %arg0, %arg1 : i32, i32
  }
  func.func @transform_1(%arg0: i32, %arg1: i32) -> (i32, i32) {
    %c0_i32 = arith.constant 0 : i32
    %c0_i32_0 = arith.constant 0 : i32
    return %arg0, %c0_i32 : i32, i32
  }
  func.func @transform_2(%arg0: i32, %arg1: i32) -> (i32, i32, i32) {
    %c0_i32 = arith.constant 0 : i32
    %c0_i32_0 = arith.constant 0 : i32
    %c0_i32_1 = arith.constant 0 : i32
    return %arg0, %c0_i32, %c0_i32_0 : i32, i32, i32
  }
}

</mosaic_0001>

<llo_original>
// kernel: tpu_custom_call.1
$region0: #{tpu_custom_call.1}
  #allocation0 [shape = 'u32[]', space=smem, size = 0x4, offset = 0x4, fixed_abs, tag = 'smem constant byte address 0x4 - core index']
  #allocation1 [shape = 'u32[144,128]{1,0:T(1,128)}', space=vmem, size = 0x12000, scoped, tag = 'internal scratch']
  #allocation2 [shape = 'f32[16,1]{1,0:T(8,128)}', space=vmem, size = 0x2000, scoped, tag = 'scratch operand']
  #allocation3 [shape = 'f32[16,1]{1,0:T(8,128)}', space=vmem, size = 0x2000, scoped, tag = 'scratch operand']
  #allocation4 [shape = 'f32[16,1]{1,0:T(8,128)}', space=vmem, size = 0x2000, scoped, tag = 'scratch operand']
  %s0 = inlined_call_operand.vmem [shape: f32[16,32], index: 0, kind: input, shape index: {}]
  %s1 = inlined_call_operand.vmem [shape: s32[16,1], index: 1, kind: input, shape index: {}]
  %s2 = inlined_call_operand.hbm [shape: f32[1,1,1], index: 2, kind: output, shape index: {}]
  %s3 = sld [smem:[#allocation0]]
  $region26: #{tpu_custom_call.1} parent=0
    _
  %s5 = ssub.s32 1, %s3
  %s6 = scalar_select 0, %s5, %s3
  $region1: #{tpu_custom_call.1} parent=0
    #allocation5 [shape = 'u8[512]{0}', space=vmem, size = 0x400, scoped, tag = 'output window, operand 0, single buffered']
    #allocation6 [shape = 's32[1]{0}', space=sflag, size = 0x4, scoped, tag = 'scoped memory for tpu_custom_call.1']
    %7 = vsyncpa [#allocation6], 0
    // Predicated region
    $region2: #{tpu_custom_call.1} parent=1 // pred_check
      _
    $region3: #{tpu_custom_call.1} parent=1 // pred_check_branch
      %9 = sbr.rel (0) target = $region5
    $region4: #{tpu_custom_call.1} parent=1 // pred_region
      _
    $region5: #{tpu_custom_call.1} parent=1 // pred_fallthru
      _
    // Predicated region
    $region6: #{tpu_custom_call.1} parent=1 // pred_check
      _
    $region7: #{tpu_custom_call.1} parent=1 // pred_check_branch
      %11 = sbr.rel (0) target = $region9
    $region8: #{tpu_custom_call.1} parent=1 // pred_region
      _
    $region9: #{tpu_custom_call.1} parent=1 // pred_fallthru
      _
    %p12 = scmp.eq.s32.totalorder 0, 0
    // Predicated region
    $region10: #{tpu_custom_call.1} parent=1 // pred_check
      %p13 = pneg %p12
    $region11: #{tpu_custom_call.1} parent=1 // pred_check_branch
      %15 = sbr.rel (%p13) target = $region13
    $region12: #{tpu_custom_call.1} parent=1 // pred_region
      %vm16 = vcmask 7168
      %17 = vst.msk [vmem:[#allocation2] sm:$0xff] %vm16, -inf
      %18 = vst.msk [vmem:[#allocation2 + $0x8] sm:$0xff] %vm16, -inf
      %19 = vst.msk [vmem:[#allocation3] sm:$0xff] %vm16, 0.0
      %20 = vst.msk [vmem:[#allocation3 + $0x8] sm:$0xff] %vm16, 0.0
      %21 = vst.msk [vmem:[#allocation4] sm:$0xff] %vm16, 0.0
      %22 = vst.msk [vmem:[#allocation4 + $0x8] sm:$0xff] %vm16, 0.0
    $region13: #{tpu_custom_call.1} parent=1 // pred_fallthru
      _
    %v23 = vld [vmem:[%s0] sm:$0xff]
    %v24 = vld [vmem:[%s0 + $0x8] sm:$0xff]
    %v25 = vld [vmem:[%s1] sm:$0xff]
    %v26 = vld [vmem:[%s1 + $0x8] sm:$0xff]
    %v27 = vlaneseq
    %v28 = vand.u32 %v27, 127
    %s29 = smul.u32 0, 32
    %v30 = vld [vmem:[#allocation2] sm:$0xff]
    %v31 = vld [vmem:[#allocation2 + $0x8] sm:$0xff]
    %vm32 = vcmask 261120
    %v33 = vsel %vm32, %v23, -inf
    %34 = vmax.xlane.f32.xlu0 %v33
    %v35 = vpop.xlane.xlu0 %34
    %v36 = vsel %vm32, %v24, -inf
    %37 = vmax.xlane.f32.xlu0 %v36
    %v38 = vpop.xlane.xlu0 %37
    %v39 = vmax.f32 %v30, %v35
    %v40 = vmax.f32 %v31, %v38
    %v41 = vsub.f32 %v30, %v39
    %v42 = vsub.f32 %v31, %v40
    %v43 = vmul.f32 %v41, 1.442695
    %v44 = vpow.pop %v43
    %v45 = vmul.f32 %v42, 1.442695
    %v46 = vpow.pop %v45
    %v47 = vld [vmem:[#allocation3] sm:$0xff]
    %v48 = vld [vmem:[#allocation3 + $0x8] sm:$0xff]
    %v49 = vmul.f32 %v44, %v47
    %v50 = vmul.f32 %v46, %v48
    %52 = vset.pattern.permute.xlu0 0
    %53 = vperm.xlu0 %52, %v39
    %v54 = vpop.permute.xlu0 %53
    %57 = vset.pattern.permute.xlu0 0
    %58 = vperm.xlu0 %57, %v40
    %v59 = vpop.permute.xlu0 %58
    %v61 = vsub.f32 %v23, %v54
    %v62 = vsub.f32 %v24, %v59
    %v63 = vmul.f32 %v61, 1.442695
    %v64 = vpow.pop %v63
    %v65 = vmul.f32 %v62, 1.442695
    %v66 = vpow.pop %v65
    %v67 = vsel %vm32, %v64, 0.0
    %68 = vadd.xlane.f32.xlu0 %v67
    %v69 = vpop.xlane.xlu0 %68
    %v70 = vsel %vm32, %v66, 0.0
    %71 = vadd.xlane.f32.xlu0 %v70
    %v72 = vpop.xlane.xlu0 %71
    %v73 = vadd.f32 %v49, %v69
    %v74 = vadd.f32 %v50, %v72
    %vm75 = vcmask 7168
    %76 = vst.msk [vmem:[#allocation3] sm:$0xff] %vm75, %v73
    %77 = vst.msk [vmem:[#allocation3 + $0x8] sm:$0xff] %vm75, %v74
    %78 = vst.msk [vmem:[#allocation2] sm:$0xff] %vm75, %v39
    %79 = vst.msk [vmem:[#allocation2 + $0x8] sm:$0xff] %vm75, %v40
    %v80 = vld [vmem:[#allocation4] sm:$0xff]
    %v81 = vld [vmem:[#allocation4 + $0x8] sm:$0xff]
    %v82 = vstv %s29
    %v83 = vsub.s32 %v25, %v82
    %v84 = vsub.s32 %v26, %v82
    %85 = vset.pattern.permute.xlu0 0
    %86 = vperm.xlu0 %85, %v83
    %v87 = vpop.permute.xlu0 %86
    %88 = vset.pattern.permute.xlu0 0
    %89 = vperm.xlu0 %88, %v84
    %v90 = vpop.permute.xlu0 %89
    %vm91 = vcmp.eq.s32.totalorder %v28, %v87
    %vm92 = vcmp.eq.s32.totalorder %v28, %v90
    %v93 = vsel %vm91, %v23, 0.0
    %v94 = vsel %vm92, %v24, 0.0
    %v95 = vsel %vm32, %v93, 0.0
    %96 = vadd.xlane.f32.xlu0 %v95
    %v97 = vpop.xlane.xlu0 %96
    %v98 = vsel %vm32, %v94, 0.0
    %99 = vadd.xlane.f32.xlu0 %v98
    %v100 = vpop.xlane.xlu0 %99
    %v101 = vadd.f32 %v80, %v97
    %v102 = vadd.f32 %v81, %v100
    %103 = vst.msk [vmem:[#allocation4] sm:$0xff] %vm75, %v101
    %104 = vst.msk [vmem:[#allocation4 + $0x8] sm:$0xff] %vm75, %v102
    // Predicated region
    $region14: #{tpu_custom_call.1} parent=1 // pred_check
      %p105 = pneg %p12
    $region15: #{tpu_custom_call.1} parent=1 // pred_check_branch
      %107 = sbr.rel (%p105) target = $region17
    $region16: #{tpu_custom_call.1} parent=1 // pred_region
      %v108 = vld [vmem:[#allocation2] sm:$0xff]
      %v109 = vld [vmem:[#allocation2 + $0x8] sm:$0xff]
      %v110 = vld [vmem:[#allocation3] sm:$0xff]
      %v111 = vld [vmem:[#allocation3 + $0x8] sm:$0xff]
      %v112 = vlog2.pop %v110
      %v113 = vmul.f32 %v112, 0.6931472
      %v114 = vlog2.pop %v111
      %v115 = vmul.f32 %v114, 0.6931472
      %v116 = vadd.f32 %v108, %v113
      %v117 = vadd.f32 %v109, %v115
      %v118 = vld [vmem:[#allocation4] sm:$0xff]
      %v119 = vld [vmem:[#allocation4 + $0x8] sm:$0xff]
      %v120 = vsub.f32 %v116, %v118
      %v121 = vsub.f32 %v117, %v119
      %s122 = smul.u32 0, 16
      %v123 = vlaneseq
      %v124 = vshrl.u32 %v123, 7
      %v125 = vadd.s32 %v124, 8
      %v126 = vstv %s122
      %v127 = vadd.s32 %v126, %v124
      %v128 = vadd.s32 %v126, %v125
      %vm129 = vcmp.lt.s32.totalorder %v127, 16
      %vm130 = vcmp.lt.s32.totalorder %v128, 16
      %v131 = vsel %vm129, %v120, 0.0
      %v132 = vsel %vm130, %v121, 0.0
      %v133 = vsel %vm75, %v131, 0.0
      %v134 = vsel %vm75, %v132, 0.0
      %v135 = vadd.f32 %v133, %v134
      %v136 = vrot.slane %v135, 4
      %v137 = vadd.f32 %v135, %v136
      %v138 = vrot.slane %v137, 2
      %v139 = vadd.f32 %v137, %v138
      %v140 = vrot.slane %v139, 1
      %v141 = vadd.f32 %v139, %v140
      %vm142 = vcmask 0
      %143 = vst.msk [vmem:[#allocation5] sm:$0x1] %vm142, %v141
    $region17: #{tpu_custom_call.1} parent=1 // pred_fallthru
      _
    // Predicated region
    $region18: #{tpu_custom_call.1} parent=1 // pred_check
      _
    $region19: #{tpu_custom_call.1} parent=1 // pred_check_branch
      %145 = sbr.rel (0) target = $region21
    $region20: #{tpu_custom_call.1} parent=1 // pred_region
      %s147 = ssub.s32 16, 16
      %148 = vsyncadd [#allocation6], %s147
      %s150 = sshll.u32 [#allocation5], 4
      %s151 = int_to_ptr.vmem [resolvable:$true] %s150
      %153 = dma.vmem_to_hbm [thread:$0]  %s151, 16, %s2, [#allocation6]
    $region21: #{tpu_custom_call.1} parent=1 // pred_fallthru
      _
    // Predicated region
    $region22: #{tpu_custom_call.1} parent=1 // pred_check
      _
    $region23: #{tpu_custom_call.1} parent=1 // pred_check_branch
      %155 = sbr.rel (0) target = $region25
    $region24: #{tpu_custom_call.1} parent=1 // pred_region
      %156 = dma.done [#allocation6], 16
    $region25: #{tpu_custom_call.1} parent=1 // pred_fallthru
      _
    %157 = vsyncpa [#allocation6], 1

</llo_original>
